<compile_context>
chip_gen: v7x
topology: tpu7x:2x2x1
jax: 0.10.0
libtpu: 0.0.40
codegen_flags: <defaults>
</compile_context>

<pallas_src>
import jax
import jax.numpy as jnp
from jax.experimental import pallas as pl
from jax.experimental.pallas import tpu as pltpu


def _copy_kernel(x_ref, o_ref):
    # Pure VMEM -> VMEM tile copy (identity on the block).
    o_ref[...] = x_ref[...]


def _round_down(v, m):
    return (v // m) * m


def _round_up(v, m):
    return ((v + m - 1) // m) * m


def _chip_params():
    """Per-generation tiling knobs (tile cap / VMEM limit / input buffer depth)."""
    kind = ""
    try:
        kind = (getattr(jax.devices()[0], "device_kind", "") or "").lower()
    except Exception:
        kind = ""
    if "v7" in kind:
        # v7x: ~3.2 TB/s HBM per TC but only 64 MiB VMEM/TC and 2 TCs.
        # 6 MiB tiles amortize the ~0.35 us/step overhead; (3 in + 2 out)
        # buffers * 6 MiB = 30 MiB stays under the 40 MiB scoped limit.
        return {"tile_cap": 6 << 20, "vmem_limit": 40 << 20, "in_buffers": 3}
    if "v6" in kind:
        # v6e: ~1.4 TB/s HBM, 128 MiB physical VMEM.
        return {"tile_cap": 4 << 20, "vmem_limit": 40 << 20, "in_buffers": 2}
    # v5e / unknown: keep (2 in + 2 out) * tile under the 16 MiB default
    # scoped-VMEM limit so no override is required.
    return {"tile_cap": 2 << 20, "vmem_limit": None, "in_buffers": 2}


def _materialized_copy(x: jax.Array) -> jax.Array:
    """Materialize a fresh copy of `x` via a lane-dense Pallas memcpy kernel."""
    total = int(x.size)
    if total == 0:
        return jnp.copy(x)

    itemsize = jnp.dtype(x.dtype).itemsize
    nbytes = total * itemsize
    # Sublane packing: 8 rows/vreg for 32-bit dtypes, 16 for bf16, 32 for int8.
    row_align = max(8, (8 * 4) // itemsize)

    # Widest lane dim (multiple of 128) that still leaves >= row_align rows.
    lane = None
    for cand in (2048, 1024, 512, 256, 128):
        if total % cand == 0 and (total // cand) >= row_align:
            lane = cand
            break
    if lane is None:
        # Tiny or non-128-divisible sizes: XLA's native copy already hits the
        # HBM roofline here; a whole-array single-block Pallas call buys
        # nothing and risks the VMEM limit for large odd-sized arrays.
        return jnp.copy(x)

    rows = total // lane
    x2d = x.reshape(rows, lane)  # wrapper-side layout plumbing only

    p = _chip_params()
    tile_cap, vmem_limit, in_buffers = p["tile_cap"], p["vmem_limit"], p["in_buffers"]

    # Largest row-aligned block under the per-tile byte cap; never exceed the
    # row-aligned floor of the row count so blocks stay within the array extent.
    cap_rows = max(row_align, _round_down(tile_cap // (lane * itemsize), row_align))
    block_rows = max(row_align, min(cap_rows, _round_down(rows, row_align)))

    # Guarantee >= 2 grid steps for arrays > ~1 MiB so both v7x TensorCores
    # get work under dimension_semantics=("parallel",). No-op on v5e/v6e (1 TC).
    if nbytes > (1 << 20) and pl.cdiv(rows, block_rows) < 2:
        half = _round_up(pl.cdiv(rows, 2), row_align)
        if row_align <= half < rows:
            block_rows = half

    # cdiv + masked partial tail: keep every tile at the optimal size instead
    # of shrinking block_rows to force exact divisibility.
    grid = (pl.cdiv(rows, block_rows),)

    in_spec_kwargs = {}
    if in_buffers > 2:
        in_spec_kwargs["pipeline_mode"] = pl.Buffered(in_buffers)
    in_spec = pl.BlockSpec((block_rows, lane), lambda i: (i, 0), **in_spec_kwargs)
    out_spec = pl.BlockSpec((block_rows, lane), lambda i: (i, 0))

    cp_kwargs = {"dimension_semantics": ("parallel",)}
    if vmem_limit is not None:
        cp_kwargs["vmem_limit_bytes"] = vmem_limit

    y2d = pl.pallas_call(
        _copy_kernel,
        out_shape=jax.ShapeDtypeStruct((rows, lane), x.dtype),
        grid=grid,
        in_specs=[in_spec],
        out_specs=out_spec,
        compiler_params=pltpu.CompilerParams(**cp_kwargs),
        cost_estimate=pl.CostEstimate(
            flops=0, transcendentals=0, bytes_accessed=2 * nbytes),
    )(x2d)
    return y2d.reshape(x.shape)


def attention_identity(x: jax.Array, materialize: bool = False) -> jax.Array:
    """Pallas equivalent of Attention(name=None).forward(x) == x.

    Default: return `x` directly (zero HBM traffic, zero kernel overhead).
    If a caller merely needs a "fresh" logical buffer, prefer jit donation /
    input_output_aliases at the wrapper level — XLA can then elide the copy
    entirely. materialize=True forces a physical copy via the Pallas kernel.
    """
    if not materialize:
        return x
    return _materialized_copy(x)


class Attention:
    """Mirror of the PyTorch module: name=None -> identity, else error."""

    def __init__(self, name=None, **params):
        if name is not None:
            raise ValueError("Attention {} is not implemented".format(name))

    def __call__(self, x, materialize: bool = False):
        return attention_identity(x, materialize=materialize)


if __name__ == "__main__":
    key = jax.random.PRNGKey(0)
    # Small NCHW input consistent with a conv-feature-map consumer.
    x = jax.random.normal(key, (2, 4, 16, 16), dtype=jnp.float32)

    attn = Attention(name=None)

    # Fast path: identity is a no-op, no kernel launched.
    y_fast = attn(x)
    assert y_fast is x

    # Materialized path: single-block lane-dense Pallas copy.
    y = jax.block_until_ready(attn(x, materialize=True))
    assert y.shape == x.shape and y.dtype == x.dtype
    assert bool(jnp.array_equal(y, x))

    # Multi-step grid + masked partial tail (f32: 75 rows of 1024 lanes).
    x2 = jax.random.normal(key, (3, 5, 40, 128), dtype=jnp.float32)
    y2 = jax.block_until_ready(attn(x2, materialize=True))
    assert bool(jnp.array_equal(y2, x2))

    # Sub-32-bit dtype: bf16 sublane alignment (16-row blocks) + partial tail.
    x3 = jax.random.normal(key, (2, 4, 24, 64), dtype=jnp.float32).astype(jnp.bfloat16)
    y3 = jax.block_until_ready(attn(x3, materialize=True))
    assert y3.dtype == jnp.bfloat16
    assert bool(jnp.array_equal(y3, x3))

    print("KERNEL_OK")
</pallas_src>

<mosaic_0001>
module attributes {stable_mosaic.version = 11 : i64} {
  func.func @_copy_kernel(%arg0: i32, %arg1: memref<8x256xf32, #tpu.memory_space<vmem>>, %arg2: memref<8x256xf32, #tpu.memory_space<vmem>>) attributes {dimension_semantics = [#tpu.dimension_semantics<parallel>], iteration_bounds = array<i64: 1>, scalar_prefetch = 0 : i64, scratch_operands = 0 : i64, tpu.core_type = #tpu.core_type<tc>, window_params = [{transform_indices = @transform_0, window_bounds = array<i64: 8, 256>}, {transform_indices = @transform_1, window_bounds = array<i64: 8, 256>}]} {
    %c0 = arith.constant 0 : index
    %c0_0 = arith.constant 0 : index
    %0 = vector.load %arg1[%c0, %c0_0] : memref<8x256xf32, #tpu.memory_space<vmem>>, vector<8x256xf32>
    %c0_1 = arith.constant 0 : index
    %c0_2 = arith.constant 0 : index
    %1 = vector.load %arg2[%c0_1, %c0_2] : memref<8x256xf32, #tpu.memory_space<vmem>>, vector<8x256xf32>
    tpu.vector_store %arg2[%c0_1, %c0_2], %0 {strides = array<i32>} : memref<8x256xf32, #tpu.memory_space<vmem>>, vector<8x256xf32>,
    return
  }
  func.func @transform_0(%arg0: i32) -> (i32, i32) {
    %c0_i32 = arith.constant 0 : i32
    %c0_i32_0 = arith.constant 0 : i32
    return %arg0, %c0_i32 : i32, i32
  }
  func.func @transform_1(%arg0: i32) -> (i32, i32) {
    %c0_i32 = arith.constant 0 : i32
    %c0_i32_0 = arith.constant 0 : i32
    return %arg0, %c0_i32 : i32, i32
  }
}

</mosaic_0001>

<llo_original>
// kernel: tpu_custom_call.1
$region0: #{tpu_custom_call.1}
  #allocation0 [shape = 'u32[]', space=smem, size = 0x4, offset = 0x4, fixed_abs, tag = 'smem constant byte address 0x4 - core index']
  #allocation1 [shape = 'u32[144,128]{1,0:T(1,128)}', space=vmem, size = 0x12000, scoped, tag = 'internal scratch']
  %s0 = inlined_call_operand.hbm [shape: f32[8,256], index: 0, kind: input, shape index: {}]
  %s1 = inlined_call_operand.hbm [shape: f32[8,256], index: 1, kind: output, shape index: {}]
  %s2 = sld [smem:[#allocation0]]
  $region18: #{tpu_custom_call.1} parent=0
    _
  %s4 = ssub.s32 1, %s2
  %s5 = scalar_select 0, %s4, %s2
  $region1: #{tpu_custom_call.1} parent=0
    #allocation2 [shape = 'u8[8192]{0}', space=vmem, size = 0x2000, scoped, tag = 'input window, operand 0, single buffered']
    #allocation3 [shape = 's32[1]{0}', space=sflag, size = 0x4, scoped, tag = 'scoped memory for tpu_custom_call.1']
    #allocation4 [shape = 's32[1]{0}', space=sflag, size = 0x4, scoped, tag = 'scoped memory for tpu_custom_call.1']
    #allocation5 [shape = 'u8[8192]{0}', space=vmem, size = 0x2000, scoped, tag = 'output window, operand 0, single buffered']
    %6 = vsyncpa [#allocation3], 0
    %7 = vsyncpa [#allocation4], 0
    // Predicated region
    $region2: #{tpu_custom_call.1} parent=1 // pred_check
      _
    $region3: #{tpu_custom_call.1} parent=1 // pred_check_branch
      %9 = sbr.rel (0) target = $region5
    $region4: #{tpu_custom_call.1} parent=1 // pred_region
      %s11 = ssub.s32 256, 256
      %12 = vsyncadd [#allocation3], %s11
      %s14 = sshll.u32 [#allocation2], 4
      %s15 = int_to_ptr.vmem [resolvable:$true] %s14
      %17 = dma.hbm_to_vmem [thread:$0]  %s0, 256, %s15, [#allocation3]
    $region5: #{tpu_custom_call.1} parent=1 // pred_fallthru
      _
    // Predicated region
    $region6: #{tpu_custom_call.1} parent=1 // pred_check
      _
    $region7: #{tpu_custom_call.1} parent=1 // pred_check_branch
      %19 = sbr.rel (0) target = $region9
    $region8: #{tpu_custom_call.1} parent=1 // pred_region
      %20 = dma.done [#allocation3], 256
    $region9: #{tpu_custom_call.1} parent=1 // pred_fallthru
      _
    %v21 = vld [vmem:[#allocation2] sm:$0xff]
    %v22 = vld [vmem:[#allocation2 + $0x8] sm:$0xff]
    %23 = vst [vmem:[#allocation5] sm:$0xff] %v21
    %24 = vst [vmem:[#allocation5 + $0x8] sm:$0xff] %v22
    // Predicated region
    $region10: #{tpu_custom_call.1} parent=1 // pred_check
      _
    $region11: #{tpu_custom_call.1} parent=1 // pred_check_branch
      %26 = sbr.rel (0) target = $region13
    $region12: #{tpu_custom_call.1} parent=1 // pred_region
      %s28 = ssub.s32 256, 256
      %29 = vsyncadd [#allocation4], %s28
      %s31 = sshll.u32 [#allocation5], 4
      %s32 = int_to_ptr.vmem [resolvable:$true] %s31
      %34 = dma.vmem_to_hbm [thread:$0]  %s32, 256, %s1, [#allocation4]
    $region13: #{tpu_custom_call.1} parent=1 // pred_fallthru
      _
    // Predicated region
    $region14: #{tpu_custom_call.1} parent=1 // pred_check
      _
    $region15: #{tpu_custom_call.1} parent=1 // pred_check_branch
      %36 = sbr.rel (0) target = $region17
    $region16: #{tpu_custom_call.1} parent=1 // pred_region
      %37 = dma.done [#allocation4], 256
    $region17: #{tpu_custom_call.1} parent=1 // pred_fallthru
      _
    %38 = vsyncpa [#allocation3], 1
    %39 = vsyncpa [#allocation4], 1

</llo_original>
